<compile_context>
chip_gen: v6e
topology: v6e:2x2x1
jax: 0.10.0
libtpu: 0.0.40
codegen_flags: <defaults>
</compile_context>

<pallas_src>
import jax
import jax.numpy as jnp
from jax.experimental import pallas as pl
from jax.experimental.pallas import tpu as pltpu

LN_EPS = 1e-5


def _round_up(n, m):
    return ((n + m - 1) // m) * m


# --------------------------------------------------------------------------- #
# Stage 1: DMA row-gather from HBM + Linear(H) + ReLU + LayerNorm -> (Mp, H)  #
# --------------------------------------------------------------------------- #
def gather_mlp_kernel(idx_ref,            # SMEM (Mp,) int32 : flat row index b*S + pos
                      x_ref,              # HBM  (B*S, D)    : activations (pl.ANY)
                      w1_ref, b1_ref,     # VMEM (D, H) bf16, (1, H) f32
                      g_ref, be_ref,      # VMEM (1, H) f32  : LayerNorm gamma / beta
                      h_ref,              # VMEM (Mp, H) bf16 output
                      xm_ref,             # VMEM (Mp, D) scratch (gathered rows)
                      sem):               # DMA semaphores (Mp,)
    Mp = xm_ref.shape[0]

    # Start every row-gather DMA before waiting on any so they all overlap.
    @pl.loop(0, Mp)
    def _start(i):
        pltpu.make_async_copy(
            x_ref.at[pl.ds(idx_ref[i], 1), :],
            xm_ref.at[pl.ds(i, 1), :],
            sem.at[i],
        ).start()

    @pl.loop(0, Mp)
    def _wait(i):
        pltpu.make_async_copy(
            x_ref.at[pl.ds(0, 1), :],      # shape-only; the wait is on sem.at[i]
            xm_ref.at[pl.ds(i, 1), :],
            sem.at[i],
        ).wait()

    # Linear -> ReLU (bf16 operands on the MXU, f32 accumulation).
    xm = xm_ref[...].astype(jnp.bfloat16)
    h = jnp.dot(xm, w1_ref[...], preferred_element_type=jnp.float32) + b1_ref[...]
    h = jnp.maximum(h, 0.0)

    # LayerNorm over the hidden axis, single pass for mean / variance (f32 math).
    mu = jnp.mean(h, axis=-1, keepdims=True)
    ms = jnp.mean(h * h, axis=-1, keepdims=True)
    var = jnp.maximum(ms - mu * mu, 0.0)
    h = (h - mu) * jax.lax.rsqrt(var + LN_EPS) * g_ref[...] + be_ref[...]

    h_ref[...] = h.astype(h_ref.dtype)


# --------------------------------------------------------------------------- #
# Stage 2: vocab projection, grid-tiled over the lane-padded vocab axis.      #
# --------------------------------------------------------------------------- #
def vocab_proj_kernel(h_ref,              # VMEM (Mp, H) bf16, resident across tiles
                      w2_ref,             # VMEM (H, TN) bf16 tile (streamed from HBM)
                      b2_ref,             # VMEM (1, TN) f32 tile
                      o_ref):             # VMEM (Mp, TN) f32 tile (lane-dense store)
    y = jnp.dot(h_ref[...], w2_ref[...], preferred_element_type=jnp.float32)
    o_ref[...] = (y + b2_ref[...]).astype(o_ref.dtype)


def masklm_pallas(x, pred_positions, w1, b1, gamma, beta, w2, b2):
    """x: (B, S, D) f32, pred_positions: (B, P) int32 -> (B, P, V) f32 logits."""
    B, S, D = x.shape
    P = pred_positions.shape[1]
    H = w1.shape[1]
    V = w2.shape[1]

    M = B * P
    Mp = _round_up(M, 8)                        # f32 sublane multiple -> dense tiles
    TN = min(2048, _round_up(V, 128))           # vocab tile width (lane-dense)
    Vp = _round_up(V, TN)

    # bf16 weights (MXU-native, halves w2 HBM streaming); biases / LN params stay f32.
    w1_bf = w1.astype(jnp.bfloat16)
    w2_bf = w2.astype(jnp.bfloat16)
    b2_f = b2.astype(jnp.float32)
    if Vp != V:
        w2_bf = jnp.pad(w2_bf, ((0, 0), (0, Vp - V)))
        b2_f = jnp.pad(b2_f, ((0, 0), (0, Vp - V)))

    # Flat gather indices matching x[repeat_interleave(arange(B), P), pos.reshape(-1)].
    pos = jnp.clip(pred_positions.astype(jnp.int32), 0, S - 1)   # guard silent OOB
    flat_idx = (jnp.arange(B, dtype=jnp.int32)[:, None] * S + pos).reshape(-1)
    flat_idx = jnp.pad(flat_idx, (0, Mp - M))   # pad rows re-gather row 0 (discarded)
    x_flat = x.reshape(B * S, D)

    # Stage 1: gather + Linear + ReLU + LayerNorm -> (Mp, H) bf16 hidden.
    hidden = pl.pallas_call(
        gather_mlp_kernel,
        out_shape=jax.ShapeDtypeStruct((Mp, H), jnp.bfloat16),
        in_specs=[
            pl.BlockSpec(memory_space=pltpu.MemorySpace.SMEM),   # flat_idx
            pl.BlockSpec(memory_space=pl.ANY),                   # x stays in HBM
            pl.BlockSpec(memory_space=pltpu.MemorySpace.VMEM),   # w1
            pl.BlockSpec(memory_space=pltpu.MemorySpace.VMEM),   # b1
            pl.BlockSpec(memory_space=pltpu.MemorySpace.VMEM),   # gamma
            pl.BlockSpec(memory_space=pltpu.MemorySpace.VMEM),   # beta
        ],
        out_specs=pl.BlockSpec(memory_space=pltpu.MemorySpace.VMEM),
        scratch_shapes=[
            pltpu.VMEM((Mp, D), x.dtype),
            pltpu.SemaphoreType.DMA((Mp,)),
        ],
    )(flat_idx, x_flat, w1_bf, b1, gamma, beta)

    # Stage 2: vocab projection; vocab axis gridded + parallel (v7x: both TCs),
    # w2 tiles double-buffered by the BlockSpec pipeline, hidden resident in VMEM.
    logits = pl.pallas_call(
        vocab_proj_kernel,
        out_shape=jax.ShapeDtypeStruct((Mp, Vp), jnp.float32),
        grid=(Vp // TN,),
        in_specs=[
            pl.BlockSpec((Mp, H), lambda j: (0, 0)),   # hidden, same block every tile
            pl.BlockSpec((H, TN), lambda j: (0, j)),   # streamed w2 tile
            pl.BlockSpec((1, TN), lambda j: (0, j)),   # streamed b2 tile
        ],
        out_specs=pl.BlockSpec((Mp, TN), lambda j: (0, j)),
        compiler_params=pltpu.CompilerParams(dimension_semantics=("parallel",)),
    )(hidden, w2_bf, b2_f)

    # TODO(synk): for real vocab sizes, keep the padded (Mp, Vp) logits and let the
    # loss mask pad rows/columns instead of paying this extra HBM copy for the slice.
    return logits[:M, :V].reshape(B, P, V)


if __name__ == "__main__":
    # Small shapes consistent with the module: batch=2, seq=8, num_inputs=32,
    # num_hiddens=32, vocab=128, 3 predicted positions per sequence.
    B, S, D, H, V, P = 2, 8, 32, 32, 128, 3

    key = jax.random.PRNGKey(0)
    kx, kp, kw1, kb1, kw2, kb2 = jax.random.split(key, 6)

    x = jax.random.normal(kx, (B, S, D), jnp.float32)
    pred_positions = jax.random.randint(kp, (B, P), 0, S, dtype=jnp.int32)

    w1 = jax.random.normal(kw1, (D, H), jnp.float32) * 0.02
    b1 = jax.random.normal(kb1, (1, H), jnp.float32) * 0.02
    gamma = jnp.ones((1, H), jnp.float32)
    beta = jnp.zeros((1, H), jnp.float32)
    w2 = jax.random.normal(kw2, (H, V), jnp.float32) * 0.02
    b2 = jax.random.normal(kb2, (1, V), jnp.float32) * 0.02

    mlm_y_hat = jax.jit(masklm_pallas)(x, pred_positions, w1, b1, gamma, beta, w2, b2)
    jax.block_until_ready(mlm_y_hat)
    assert mlm_y_hat.shape == (B, P, V)

    # Pure-JAX f32 reference (same semantics as the PyTorch module).
    batch_idx = jnp.repeat(jnp.arange(B), P)
    mx = x[batch_idx, pred_positions.reshape(-1)]                  # (B*P, D)
    h = jnp.maximum(mx @ w1 + b1, 0.0)
    mu = h.mean(-1, keepdims=True)
    var = ((h - mu) ** 2).mean(-1, keepdims=True)
    h = (h - mu) / jnp.sqrt(var + LN_EPS) * gamma + beta
    ref = (h @ w2 + b2).reshape(B, P, V)

    # Kernel uses bf16 matmul operands with f32 accumulation -> modest tolerance.
    assert jnp.allclose(mlm_y_hat, ref, atol=3e-2, rtol=3e-2), "mismatch vs reference"
    print("KERNEL_OK")
</pallas_src>

<mosaic_0001>
module attributes {stable_mosaic.version = 11 : i64} {
  func.func @gather_mlp_kernel(%arg0: memref<8xi32, #tpu.memory_space<smem>>, %arg1: memref<16x32xf32, #tpu.memory_space<any>>, %arg2: memref<32x32xbf16, #tpu.memory_space<vmem>>, %arg3: memref<1x32xf32, #tpu.memory_space<vmem>>, %arg4: memref<1x32xf32, #tpu.memory_space<vmem>>, %arg5: memref<1x32xf32, #tpu.memory_space<vmem>>, %arg6: memref<8x32xbf16, #tpu.memory_space<vmem>>, %arg7: memref<8x32xf32, #tpu.memory_space<vmem>>, %arg8: memref<8x!tpu.dma_semaphore, #tpu.memory_space<semaphore_mem>>) attributes {dimension_semantics = [], scalar_prefetch = 0 : i64, scratch_operands = 2 : i64, tpu.core_type = #tpu.core_type<tc>} {
    %c0_i32 = arith.constant 0 : i32
    %c8_i32 = arith.constant 8 : i32
    %0 = arith.addi %c0_i32, %c8_i32 : i32
    %c1_i32 = arith.constant 1 : i32
    scf.for %arg9 = %c0_i32 to %0 step %c1_i32  : i32 {
      %c1_i32_23 = arith.constant 1 : i32
      %39 = arith.muli %arg9, %c1_i32_23 : i32
      %c0_i32_24 = arith.constant 0 : i32
      %40 = arith.addi %c0_i32_24, %39 : i32
      %41 = arith.index_cast %40 : i32 to index
      %42 = memref.load %arg0[%41] : memref<8xi32, #tpu.memory_space<smem>>
      %c0_i32_25 = arith.constant 0 : i32
      %43 = tpu.memref_slice %arg1[%42, %c0_i32_25] : memref<16x32xf32, #tpu.memory_space<any>> -> memref<1x32xf32, #tpu.memory_space<any>>
      %c0_i32_26 = arith.constant 0 : i32
      %44 = tpu.memref_slice %arg7[%40, %c0_i32_26] : memref<8x32xf32, #tpu.memory_space<vmem>> -> memref<1x32xf32, #tpu.memory_space<vmem>>
      %45 = tpu.memref_slice %arg8[%40] : memref<8x!tpu.dma_semaphore, #tpu.memory_space<semaphore_mem>> -> memref<1x!tpu.dma_semaphore, #tpu.memory_space<semaphore_mem>>
      %46 = tpu.memref_squeeze %45 : memref<1x!tpu.dma_semaphore, #tpu.memory_space<semaphore_mem>> -> memref<!tpu.dma_semaphore, #tpu.memory_space<semaphore_mem>>
      tpu.enqueue_dma source(%43 : memref<1x32xf32, #tpu.memory_space<any>>) target(%44 : memref<1x32xf32, #tpu.memory_space<vmem>>) target_semaphore(%46 : memref<!tpu.dma_semaphore, #tpu.memory_space<semaphore_mem>>)
    }
    %c8_i32_0 = arith.constant 8 : i32
    %c0_i32_1 = arith.constant 0 : i32
    %c8_i32_2 = arith.constant 8 : i32
    %1 = arith.addi %c0_i32_1, %c8_i32_2 : i32
    %c1_i32_3 = arith.constant 1 : i32
    scf.for %arg9 = %c0_i32_1 to %1 step %c1_i32_3  : i32 {
      %c1_i32_23 = arith.constant 1 : i32
      %39 = arith.muli %arg9, %c1_i32_23 : i32
      %c0_i32_24 = arith.constant 0 : i32
      %40 = arith.addi %c0_i32_24, %39 : i32
      %c0_i32_25 = arith.constant 0 : i32
      %c0_i32_26 = arith.constant 0 : i32
      %41 = tpu.memref_slice %arg1[%c0_i32_25, %c0_i32_26] : memref<16x32xf32, #tpu.memory_space<any>> -> memref<1x32xf32, #tpu.memory_space<any>>
      %c0_i32_27 = arith.constant 0 : i32
      %42 = tpu.memref_slice %arg7[%40, %c0_i32_27] : memref<8x32xf32, #tpu.memory_space<vmem>> -> memref<1x32xf32, #tpu.memory_space<vmem>>
      %43 = tpu.memref_slice %arg8[%40] : memref<8x!tpu.dma_semaphore, #tpu.memory_space<semaphore_mem>> -> memref<1x!tpu.dma_semaphore, #tpu.memory_space<semaphore_mem>>
      %44 = tpu.memref_squeeze %43 : memref<1x!tpu.dma_semaphore, #tpu.memory_space<semaphore_mem>> -> memref<!tpu.dma_semaphore, #tpu.memory_space<semaphore_mem>>
      tpu.wait_dma2 semaphore(%44 : memref<!tpu.dma_semaphore, #tpu.memory_space<semaphore_mem>>) src(%41 : memref<1x32xf32, #tpu.memory_space<any>>) dst(%42 : memref<1x32xf32, #tpu.memory_space<vmem>>)
    }
    %c8_i32_4 = arith.constant 8 : i32
    %c0 = arith.constant 0 : index
    %c0_5 = arith.constant 0 : index
    %2 = vector.load %arg7[%c0, %c0_5] : memref<8x32xf32, #tpu.memory_space<vmem>>, vector<8x32xf32>
    %3 = arith.truncf %2 : vector<8x32xf32> to vector<8x32xbf16>
    %c0_6 = arith.constant 0 : index
    %c0_7 = arith.constant 0 : index
    %4 = vector.load %arg2[%c0_6, %c0_7] : memref<32x32xbf16, #tpu.memory_space<vmem>>, vector<32x32xbf16>
    %cst = arith.constant dense<0.000000e+00> : vector<8x32xf32>
    %5 = tpu.matmul %3, %4, %cst {dimension_numbers = #tpu.dot_dimension_numbers<[1], [0], [0], [1], [0, 0, 1, 1], [], []>} : vector<8x32xbf16>, vector<32x32xbf16>, vector<8x32xf32> -> vector<8x32xf32>
    %c0_8 = arith.constant 0 : index
    %c0_9 = arith.constant 0 : index
    %6 = vector.load %arg3[%c0_8, %c0_9] : memref<1x32xf32, #tpu.memory_space<vmem>>, vector<1x32xf32>
    %7 = vector.broadcast %6 : vector<1x32xf32> to vector<8x32xf32>
    %8 = arith.addf %5, %7 : vector<8x32xf32>
    %cst_10 = arith.constant 0.000000e+00 : f32
    %9 = vector.broadcast %cst_10 : f32 to vector<8x32xf32>
    %10 = arith.maximumf %8, %9 : vector<8x32xf32>
    %cst_11 = arith.constant dense<0.000000e+00> : vector<8xf32>
    %11 = vector.multi_reduction <add>, %10, %cst_11 [1] : vector<8x32xf32> to vector<8xf32>
    %12 = vector.shape_cast %11 : vector<8xf32> to vector<8x1xf32>
    %cst_12 = arith.constant 3.200000e+01 : f32
    %13 = vector.broadcast %cst_12 : f32 to vector<8x1xf32>
    %14 = arith.divf %12, %13 : vector<8x1xf32>
    %15 = arith.mulf %10, %10 : vector<8x32xf32>
    %cst_13 = arith.constant dense<0.000000e+00> : vector<8xf32>
    %16 = vector.multi_reduction <add>, %15, %cst_13 [1] : vector<8x32xf32> to vector<8xf32>
    %17 = vector.shape_cast %16 : vector<8xf32> to vector<8x1xf32>
    %cst_14 = arith.constant 3.200000e+01 : f32
    %18 = vector.broadcast %cst_14 : f32 to vector<8x1xf32>
    %19 = arith.divf %17, %18 : vector<8x1xf32>
    %20 = arith.mulf %14, %14 : vector<8x1xf32>
    %21 = arith.subf %19, %20 : vector<8x1xf32>
    %cst_15 = arith.constant 0.000000e+00 : f32
    %22 = vector.broadcast %cst_15 : f32 to vector<8x1xf32>
    %23 = arith.maximumf %21, %22 : vector<8x1xf32>
    %24 = vector.broadcast %14 : vector<8x1xf32> to vector<8x32xf32>
    %25 = arith.subf %10, %24 : vector<8x32xf32>
    %cst_16 = arith.constant 9.99999974E-6 : f32
    %26 = vector.broadcast %cst_16 : f32 to vector<8x1xf32>
    %27 = arith.addf %23, %26 : vector<8x1xf32>
    %28 = math.rsqrt %27 : vector<8x1xf32>
    %29 = vector.broadcast %28 : vector<8x1xf32> to vector<8x32xf32>
    %30 = arith.mulf %25, %29 : vector<8x32xf32>
    %c0_17 = arith.constant 0 : index
    %c0_18 = arith.constant 0 : index
    %31 = vector.load %arg4[%c0_17, %c0_18] : memref<1x32xf32, #tpu.memory_space<vmem>>, vector<1x32xf32>
    %32 = vector.broadcast %31 : vector<1x32xf32> to vector<8x32xf32>
    %33 = arith.mulf %30, %32 : vector<8x32xf32>
    %c0_19 = arith.constant 0 : index
    %c0_20 = arith.constant 0 : index
    %34 = vector.load %arg5[%c0_19, %c0_20] : memref<1x32xf32, #tpu.memory_space<vmem>>, vector<1x32xf32>
    %35 = vector.broadcast %34 : vector<1x32xf32> to vector<8x32xf32>
    %36 = arith.addf %33, %35 : vector<8x32xf32>
    %37 = arith.truncf %36 : vector<8x32xf32> to vector<8x32xbf16>
    %c0_21 = arith.constant 0 : index
    %c0_22 = arith.constant 0 : index
    %38 = vector.load %arg6[%c0_21, %c0_22] : memref<8x32xbf16, #tpu.memory_space<vmem>>, vector<8x32xbf16>
    tpu.vector_store %arg6[%c0_21, %c0_22], %37 {strides = array<i32>} : memref<8x32xbf16, #tpu.memory_space<vmem>>, vector<8x32xbf16>,
    return
  }
}

module attributes {stable_mosaic.version = 11 : i64} {
  func.func @vocab_proj_kernel(%arg0: i32, %arg1: memref<8x32xbf16, #tpu.memory_space<vmem>>, %arg2: memref<32x128xbf16, #tpu.memory_space<vmem>>, %arg3: memref<1x128xf32, #tpu.memory_space<vmem>>, %arg4: memref<8x128xf32, #tpu.memory_space<vmem>>) attributes {dimension_semantics = [#tpu.dimension_semantics<parallel>], iteration_bounds = array<i64: 1>, scalar_prefetch = 0 : i64, scratch_operands = 0 : i64, tpu.core_type = #tpu.core_type<tc>, window_params = [{pipeline_mode = #tpu.pipeline_mode<synchronous>, transform_indices = @transform_0, window_bounds = array<i64: 8, 32>}, {transform_indices = @transform_1, window_bounds = array<i64: 32, 128>}, {transform_indices = @transform_2, window_bounds = array<i64: 1, 128>}, {transform_indices = @transform_3, window_bounds = array<i64: 8, 128>}]} {
    %c0 = arith.constant 0 : index
    %c0_0 = arith.constant 0 : index
    %0 = vector.load %arg1[%c0, %c0_0] : memref<8x32xbf16, #tpu.memory_space<vmem>>, vector<8x32xbf16>
    %c0_1 = arith.constant 0 : index
    %c0_2 = arith.constant 0 : index
    %1 = vector.load %arg2[%c0_1, %c0_2] : memref<32x128xbf16, #tpu.memory_space<vmem>>, vector<32x128xbf16>
    %cst = arith.constant dense<0.000000e+00> : vector<8x128xf32>
    %2 = tpu.matmul %0, %1, %cst {dimension_numbers = #tpu.dot_dimension_numbers<[1], [0], [0], [1], [0, 0, 1, 1], [], []>} : vector<8x32xbf16>, vector<32x128xbf16>, vector<8x128xf32> -> vector<8x128xf32>
    %c0_3 = arith.constant 0 : index
    %c0_4 = arith.constant 0 : index
    %3 = vector.load %arg3[%c0_3, %c0_4] : memref<1x128xf32, #tpu.memory_space<vmem>>, vector<1x128xf32>
    %4 = vector.broadcast %3 : vector<1x128xf32> to vector<8x128xf32>
    %5 = arith.addf %2, %4 : vector<8x128xf32>
    %c0_5 = arith.constant 0 : index
    %c0_6 = arith.constant 0 : index
    %6 = vector.load %arg4[%c0_5, %c0_6] : memref<8x128xf32, #tpu.memory_space<vmem>>, vector<8x128xf32>
    tpu.vector_store %arg4[%c0_5, %c0_6], %5 {strides = array<i32>} : memref<8x128xf32, #tpu.memory_space<vmem>>, vector<8x128xf32>,
    return
  }
  func.func @transform_0(%arg0: i32) -> (i32, i32) {
    %c0_i32 = arith.constant 0 : i32
    %c0_i32_0 = arith.constant 0 : i32
    %c0_i32_1 = arith.constant 0 : i32
    return %c0_i32, %c0_i32_0 : i32, i32
  }
  func.func @transform_1(%arg0: i32) -> (i32, i32) {
    %c0_i32 = arith.constant 0 : i32
    %c0_i32_0 = arith.constant 0 : i32
    return %c0_i32, %arg0 : i32, i32
  }
  func.func @transform_2(%arg0: i32) -> (i32, i32) {
    %c0_i32 = arith.constant 0 : i32
    %c0_i32_0 = arith.constant 0 : i32
    return %c0_i32, %arg0 : i32, i32
  }
  func.func @transform_3(%arg0: i32) -> (i32, i32) {
    %c0_i32 = arith.constant 0 : i32
    %c0_i32_0 = arith.constant 0 : i32
    return %c0_i32, %arg0 : i32, i32
  }
}

</mosaic_0001>

<llo_original>
// kernel: masklm_pallas.3
$region0: #{masklm_pallas.3}
  #allocation0 [shape = 'u32[]', space=smem, size = 0x4, offset = 0x4, fixed_abs, tag = 'smem constant byte address 0x4 - core index']
  #allocation1 [shape = 'u32[144,128]{1,0:T(1,128)}', space=vmem, size = 0x12000, scoped, tag = 'internal scratch']
  %s0 = inlined_call_operand.vmem [shape: bf16[8,32], index: 0, kind: input, shape index: {}]
  %s1 = inlined_call_operand.vmem [shape: bf16[32,128], index: 1, kind: input, shape index: {}]
  %s2 = inlined_call_operand.vmem [shape: f32[1,128], index: 2, kind: input, shape index: {}]
  %s3 = inlined_call_operand.vmem [shape: f32[8,128], index: 3, kind: output, shape index: {}]
  %s4 = sld [smem:[#allocation0]]
  $region22: #{masklm_pallas.3} parent=0
    _
  %s6 = ssub.s32 1, %s4
  %s7 = scalar_select 0, %s6, %s4
  // Predicated region
  $region2: #{masklm_pallas.3} parent=0 // pred_check
    _
  $region3: #{masklm_pallas.3} parent=0 // pred_check_branch
    %9 = sbr.rel (0) target = $region5
  $region4: #{masklm_pallas.3} parent=0 // pred_region
    _
  $region5: #{masklm_pallas.3} parent=0 // pred_fallthru
    _
  // Predicated region
  $region6: #{masklm_pallas.3} parent=0 // pred_check
    _
  $region7: #{masklm_pallas.3} parent=0 // pred_check_branch
    %11 = sbr.rel (0) target = $region9
  $region8: #{masklm_pallas.3} parent=0 // pred_region
    _
  $region9: #{masklm_pallas.3} parent=0 // pred_fallthru
    _
  // Predicated region
  $region10: #{masklm_pallas.3} parent=0 // pred_check
    _
  $region11: #{masklm_pallas.3} parent=0 // pred_check_branch
    %13 = sbr.rel (0) target = $region13
  $region12: #{masklm_pallas.3} parent=0 // pred_region
    _
  $region13: #{masklm_pallas.3} parent=0 // pred_fallthru
    _
  %v15 = vld [vmem:[%s0] sm:$0xf]
  %v16 = vld [vmem:[%s1] sm:$0xf]
  %v17 = vld [vmem:[%s1 + $0x4] sm:$0xf]
  %v18 = vld [vmem:[%s1 + $0x8] sm:$0xf]
  %v19 = vld [vmem:[%s1 + $0xc] sm:$0xf]
  %v20 = vld [vmem:[%s2] sm:$0x1]
  %v22 = vlaneseq
  %v23 = vshrl.u32 %v22, 7
  %v24 = vsub.s32 0, %v23
  %v25 = vrot.slane %v20, %v24
  %v31 = vunpack.c.l.b16 %v16
  %v32 = vunpack.c.l.b16 %v17
  %v33 = vunpack.c.l.b16 %v18
  %v34 = vunpack.c.l.b16 %v19
  %v35 = vpack.c.b16 %v32, %v31
  %v36 = vpack.c.b16 %v34, %v33
  %vm39 = vcmask 261120
  %v41 = vsel %vm39, %v15, 0
  %43 = vmatprep.subr.bf16.mxu0 0
  %44 = vmatpush1.bf16.msra.mxu0 0
  %45 = vmatprep.subr.bf16.mxu0 0
  %46 = vmatpush1.bf16.msra.mxu0 0
  %47 = vmatprep.subr.bf16.mxu0 0
  %48 = vmatpush1.bf16.msra.mxu0 0
  %49 = vmatprep.subr.bf16.mxu0 0
  %50 = vmatpush1.bf16.msra.mxu0 0
  %51 = vmatprep.subr.bf16.mxu0 0
  %52 = vmatpush1.bf16.msra.mxu0 0
  %53 = vmatprep.subr.bf16.mxu0 0
  %54 = vmatpush1.bf16.msra.mxu0 0
  %55 = vmatprep.subr.bf16.mxu0 0
  %56 = vmatpush1.bf16.msra.mxu0 %v36
  %57 = vmatprep.subr.bf16.mxu0 0
  %58 = vmatpush1.bf16.msra.mxu0 %v35
  %59 = vmatprep.subr.bf16.mxu0 0
  %60 = vmatpush2.bf16.msra.mxu0 0
  %61 = vmatprep.subr.bf16.mxu0 0
  %62 = vmatpush2.bf16.msra.mxu0 0
  %63 = vmatprep.subr.bf16.mxu0 0
  %64 = vmatpush2.bf16.msra.mxu0 0
  %65 = vmatprep.subr.bf16.mxu0 0
  %66 = vmatpush2.bf16.msra.mxu0 0
  %67 = vmatprep.subr.bf16.mxu0 0
  %68 = vmatpush2.bf16.msra.mxu0 0
  %69 = vmatprep.subr.bf16.mxu0 0
  %70 = vmatpush2.bf16.msra.mxu0 0
  %71 = vmatprep.subr.bf16.mxu0 0
  %72 = vmatpush2.bf16.msra.mxu0 0
  %73 = vmatprep.subr.bf16.mxu0 0
  %74 = vmatpush2.bf16.msra.mxu0 0
  %75 = vmatprep.mubr.bf16.mxu0 0
  %76 = vmatmul.mubr.bf16.gmra.mxu0 %v41
  %v77 = vpop.f32.mrf.mxu0
  %v78 = vadd.f32 %v25, %v77
  %v79 = vpop.f32.mrf.mxu0
  %v80 = vpop.f32.mrf.mxu0
  %v81 = vpop.f32.mrf.mxu0
  %82 = vdwg.mxu0
  %83 = vst [vmem:[%s3] sm:$0xff] %v78
  // Predicated region
  $region14: #{masklm_pallas.3} parent=0 // pred_check
    _
  $region15: #{masklm_pallas.3} parent=0 // pred_check_branch
    %85 = sbr.rel (0) target = $region17
  $region16: #{masklm_pallas.3} parent=0 // pred_region
    _
  $region17: #{masklm_pallas.3} parent=0 // pred_fallthru
    _
  // Predicated region
  $region18: #{masklm_pallas.3} parent=0 // pred_check
    _
  $region19: #{masklm_pallas.3} parent=0 // pred_check_branch
    %87 = sbr.rel (0) target = $region21
  $region20: #{masklm_pallas.3} parent=0 // pred_region
    _
  $region21: #{masklm_pallas.3} parent=0 // pred_fallthru
    _

// kernel: masklm_pallas.2
$region0: #{masklm_pallas.2}
  #allocation0 [shape = 'u32[]', space=smem, size = 0x4, offset = 0x4, fixed_abs, tag = 'smem constant byte address 0x4 - core index']
  #allocation1 [shape = 'u32[144,128]{1,0:T(1,128)}', space=vmem, size = 0x12000, scoped, tag = 'internal scratch']
  #allocation2 [shape = 'f32[8,32]{1,0:T(8,128)}', space=vmem, size = 0x1000, scoped, tag = 'scratch operand']
  #allocation3 [shape = 's32[8]{0}', space=sflag, size = 0x20, scoped, tag = 'scratch operand']
  #allocation6 [shape = 's32[]', space=sflag, size = 0x4, offset = 0, fixed_abs, tag = 'sflag constant byte address 0x0 - dummy sync flag']
  %s0 = inlined_call_operand.vmem [shape: s32[8], index: 0, kind: input, shape index: {}]
  %s1 = inlined_call_operand.vmem [shape: f32[16,32], index: 1, kind: input, shape index: {}]
  %s2 = inlined_call_operand.vmem [shape: bf16[32,32], index: 2, kind: input, shape index: {}]
  %s3 = inlined_call_operand.vmem [shape: f32[1,32], index: 3, kind: input, shape index: {}]
  %s4 = inlined_call_operand.vmem [shape: f32[1,32], index: 4, kind: input, shape index: {}]
  %s5 = inlined_call_operand.vmem [shape: f32[1,32], index: 5, kind: input, shape index: {}]
  %s6 = inlined_call_operand.vmem [shape: bf16[8,32], index: 6, kind: output, shape index: {}]
  %s7 = sld [smem:[#allocation0]]
  $region78: #{masklm_pallas.2} parent=0
    _
  %s9 = ssub.s32 1, %s7
  %s10 = scalar_select 0, %s9, %s7
  $region1: #{masklm_pallas.2} parent=0
    #allocation4 [shape = 'u8[512]{0}', space=smem, size = 0x200, scoped, tag = 'input window, operand 0, single buffered']
    #allocation5 [shape = 's32[1]{0}', space=sflag, size = 0x4, scoped, tag = 'scoped memory for masklm_pallas.2']
    %11 = vsyncpa [#allocation5], 0
    // Predicated region
    $region2: #{masklm_pallas.2} parent=1 // pred_check
      _
    $region3: #{masklm_pallas.2} parent=1 // pred_check_branch
      %13 = sbr.rel (0) target = $region5
    $region4: #{masklm_pallas.2} parent=1 // pred_region
      %s15 = ssub.s32 16, 16
      %16 = vsyncadd [#allocation5], %s15
      %s18 = sshll.u32 %s0, 4
      %s19 = int_to_ptr.vmem [resolvable:$true] %s18
      %21 = dma.vmem_to_smem %s19, 16, [#allocation4], [#allocation5]
    $region5: #{masklm_pallas.2} parent=1 // pred_fallthru
      _
    // Predicated region
    $region6: #{masklm_pallas.2} parent=1 // pred_check
      _
    $region7: #{masklm_pallas.2} parent=1 // pred_check_branch
      %23 = sbr.rel (0) target = $region9
    $region8: #{masklm_pallas.2} parent=1 // pred_region
      _
    $region9: #{masklm_pallas.2} parent=1 // pred_fallthru
      _
    // Predicated region
    $region10: #{masklm_pallas.2} parent=1 // pred_check
      _
    $region11: #{masklm_pallas.2} parent=1 // pred_check_branch
      %25 = sbr.rel (0) target = $region13
    $region12: #{masklm_pallas.2} parent=1 // pred_region
      _
    $region13: #{masklm_pallas.2} parent=1 // pred_fallthru
      _
    // Predicated region
    $region14: #{masklm_pallas.2} parent=1 // pred_check
      _
    $region15: #{masklm_pallas.2} parent=1 // pred_check_branch
      %27 = sbr.rel (0) target = $region17
    $region16: #{masklm_pallas.2} parent=1 // pred_region
      _
    $region17: #{masklm_pallas.2} parent=1 // pred_fallthru
      _
    // Predicated region
    $region18: #{masklm_pallas.2} parent=1 // pred_check
      _
    $region19: #{masklm_pallas.2} parent=1 // pred_check_branch
      %29 = sbr.rel (0) target = $region21
    $region20: #{masklm_pallas.2} parent=1 // pred_region
      _
    $region21: #{masklm_pallas.2} parent=1 // pred_fallthru
      _
    // Predicated region
    $region22: #{masklm_pallas.2} parent=1 // pred_check
      _
    $region23: #{masklm_pallas.2} parent=1 // pred_check_branch
      %31 = sbr.rel (0) target = $region25
    $region24: #{masklm_pallas.2} parent=1 // pred_region
      %32 = dma.done [#allocation5], 16
    $region25: #{masklm_pallas.2} parent=1 // pred_fallthru
      _
    %33 = sfence
    loop: start=0, step=1, limit=8
    $region26: #{masklm_pallas.2} parent=1 // loop_pre_header
      _
    $region27: #{masklm_pallas.2} parent=1 // loop_header
      %s36 = sphi 0, %s40
      %p37 = scmp.ge.s32.totalorder %s36, 8
    $region28: #{masklm_pallas.2} parent=1 // loop_header_branch
      %39 = sbr.rel (%p37) target = $region32
    $region29: #{masklm_pallas.2} parent=1 // loop_body
      %s41 = sld [smem:[#allocation4 + %s36]]
      %s42 = scalar_lea.vmem %s1, %s41
      %s43 = scalar_lea.vmem [#allocation2], %s36
      %s44 = scalar_lea.sflag [#allocation3], %s36
      %p46 = scmp.lt.u32.totalorder 1, 8
      %p47 = pneg %p46
      // Predicated region
      $region33: #{masklm_pallas.2} parent=29 // pred_check
        _
      $region34: #{masklm_pallas.2} parent=29 // pred_check_branch
        %49 = sbr.rel (%p46) target = $region36
      $region35: #{masklm_pallas.2} parent=29 // pred_region
        %s65 = sand.u32 1, 7
        %p66 = scmp.eq.s32.totalorder %s65, 0
        %p67 = pneg %p66
        // Predicated region
        $region48: #{masklm_pallas.2} parent=35 // pred_check
          _
        $region49: #{masklm_pallas.2} parent=35 // pred_check_branch
          %69 = sbr.rel (%p66) target = $region51
        $region50: #{masklm_pallas.2} parent=35 // pred_region
          %s70 = sand.u32 1, 7
          %s71 = ssub.s32 1, %s70
          %s72 = scalar_lea.vmem %s42, %s71
          %s73 = ssub.s32 1, %s70
          %s74 = scalar_lea.vmem %s43, %s73 [#allocation2]
          %s75 = sshll.u32 1, %s70
          %s76 = ssub.s32 %s75, 1
          loop: start=0, step=1, limit=1
          $region52: #{masklm_pallas.2} parent=50 // loop_pre_header
            _
          $region53: #{masklm_pallas.2} parent=50 // loop_header
            %s78 = sphi 0, %s82
            %p79 = scmp.ge.s32.totalorder %s78, 1
            %s83 = sphi %s72, %s72
            %s84 = sphi %s74, %s74
          $region54: #{masklm_pallas.2} parent=50 // loop_header_branch
            %81 = sbr.rel (%p79) target = $region58
          $region55: #{masklm_pallas.2} parent=50 // loop_body
            %v85 = vld [vmem:[%s83] sm:%s76]
            %86 = vst [vmem:[%s84] sm:%s76] %v85
          $region56: #{masklm_pallas.2} parent=50 // loop_footer
            %s82 = sadd.s32 1, %s78
          $region57: #{masklm_pallas.2} parent=50 // loop_footer_branch
            %77 = sbr.rel target = $region53
          $region58: #{masklm_pallas.2} parent=50 // loop_exit
            _
        $region51: #{masklm_pallas.2} parent=35 // pred_fallthru
          _
      $region36: #{masklm_pallas.2} parent=29 // pred_fallthru
        _
      // Predicated region
      $region37: #{masklm_pallas.2} parent=29 // pred_check
        %p50 = pneg %p46
      $region38: #{masklm_pallas.2} parent=29 // pred_check_branch
        %52 = sbr.rel (%p50) target = $region40
      $region39: #{masklm_pallas.2} parent=29 // pred_region
        %s53 = sshll.u32 1, 1
        %s54 = ssub.s32 %s53, 1
        loop: start=0, step=1, limit=1
        $region41: #{masklm_pallas.2} parent=39 // loop_pre_header
          _
        $region42: #{masklm_pallas.2} parent=39 // loop_header
          %s56 = sphi 0, %s60
          %p57 = scmp.ge.s32.totalorder %s56, 1
          %s61 = sphi %s42, %s42
          %s62 = sphi %s43, %s43
        $region43: #{masklm_pallas.2} parent=39 // loop_header_branch
          %59 = sbr.rel (%p57) target = $region47
        $region44: #{masklm_pallas.2} parent=39 // loop_body
          %v63 = vld [vmem:[%s61] sm:%s54]
          %64 = vst [vmem:[%s62] sm:%s54] %v63
        $region45: #{masklm_pallas.2} parent=39 // loop_footer
          %s60 = sadd.s32 1, %s56
        $region46: #{masklm_pallas.2} parent=39 // loop_footer_branch
          %55 = sbr.rel target = $region42
        $region47: #{masklm_pallas.2} parent=39 // loop_exit
          _
      $region40: #{masklm_pallas.2} parent=29 // pred_fallthru
        _
      // Predicated region
      $region59: #{masklm_pallas.2} parent=29 // pred_check
        _
      $region60: #{masklm_pallas.2} parent=29 // pred_check_branch
        %89 = sbr.rel (0) target = $region62
      $region61: #{masklm_pallas.2} parent=29 // pred_region
        %90 = vsyncadd %s44, 16
      $region62: #{masklm_pallas.2} parent=29 // pred_fallthru
        _
    $region30: #{masklm_pallas.2} parent=1 // loop_footer
      %s40 = sadd.s32 1, %s36
    $region31: #{masklm_pallas.2} parent=1 // loop_footer_branch
      %35 = sbr.rel target = $region27
    $region32: #{masklm_pallas.2} parent=1 // loop_exit
      _
    loop: start=0, step=1, limit=8
    $region63: #{masklm_pallas.2} parent=1 // loop_pre_header
      _
    $region64: #{masklm_pallas.2} parent=1 // loop_header
      %s92 = sphi 0, %s96
      %p93 = scmp.ge.s32.totalorder %s92, 8
    $region65: #{masklm_pallas.2} parent=1 // loop_header_branch
      %95 = sbr.rel (%p93) target = $region69
    $region66: #{masklm_pallas.2} parent=1 // loop_body
      %s97 = scalar_lea.sflag [#allocation3], %s92
      %s98 = smul.u32 1, 1
      %s99 = sshll.u32 %s98, 4
      %100 = dma.done %s97, %s99
    $region67: #{masklm_pallas.2} parent=1 // loop_footer
      %s96 = sadd.s32 1, %s92
    $region68: #{masklm_pallas.2} parent=1 // loop_footer_branch
      %91 = sbr.rel target = $region64
    $region69: #{masklm_pallas.2} parent=1 // loop_exit
      _
    %v101 = vld [vmem:[#allocation2] sm:$0xff]
    %v102 = vpack.c.bf16 %v101, %v101
    %v103 = vld [vmem:[%s2] sm:$0xf]
    %v104 = vld [vmem:[%s2 + $0x4] sm:$0xf]
    %v105 = vld [vmem:[%s2 + $0x8] sm:$0xf]
    %v106 = vld [vmem:[%s2 + $0xc] sm:$0xf]
    %v107 = vld [vmem:[%s3] sm:$0x1]
    %v109 = vlaneseq
    %v110 = vshrl.u32 %v109, 7
    %v111 = vsub.s32 0, %v110
    %v112 = vrot.slane %v107, %v111
    %v118 = vunpack.c.l.b16 %v103
    %v119 = vunpack.c.l.b16 %v104
    %v120 = vunpack.c.l.b16 %v105
    %v121 = vunpack.c.l.b16 %v106
    %v122 = vpack.c.b16 %v119, %v118
    %v123 = vpack.c.b16 %v121, %v120
    %vm126 = vcmask 261120
    %v128 = vsel %vm126, %v102, 0
    %130 = vmatprep.subr.bf16.mxu0 0
    %131 = vmatpush1.bf16.msra.mxu0 0
    %132 = vmatprep.subr.bf16.mxu0 0
    %133 = vmatpush1.bf16.msra.mxu0 0
    %134 = vmatprep.subr.bf16.mxu0 0
    %135 = vmatpush1.bf16.msra.mxu0 0
    %136 = vmatprep.subr.bf16.mxu0 0
    %137 = vmatpush1.bf16.msra.mxu0 0
    %138 = vmatprep.subr.bf16.mxu0 0
    %139 = vmatpush1.bf16.msra.mxu0 0
    %140 = vmatprep.subr.bf16.mxu0 0
    %141 = vmatpush1.bf16.msra.mxu0 0
    %142 = vmatprep.subr.bf16.mxu0 0
    %143 = vmatpush1.bf16.msra.mxu0 %v123
    %144 = vmatprep.subr.bf16.mxu0 0
    %145 = vmatpush1.bf16.msra.mxu0 %v122
    %146 = vmatprep.subr.bf16.mxu0 0
    %147 = vmatpush2.bf16.msra.mxu0 0
    %148 = vmatprep.subr.bf16.mxu0 0
    %149 = vmatpush2.bf16.msra.mxu0 0
    %150 = vmatprep.subr.bf16.mxu0 0
    %151 = vmatpush2.bf16.msra.mxu0 0
    %152 = vmatprep.subr.bf16.mxu0 0
    %153 = vmatpush2.bf16.msra.mxu0 0
    %154 = vmatprep.subr.bf16.mxu0 0
    %155 = vmatpush2.bf16.msra.mxu0 0
    %156 = vmatprep.subr.bf16.mxu0 0
    %157 = vmatpush2.bf16.msra.mxu0 0
    %158 = vmatprep.subr.bf16.mxu0 0
    %159 = vmatpush2.bf16.msra.mxu0 0
    %160 = vmatprep.subr.bf16.mxu0 0
    %161 = vmatpush2.bf16.msra.mxu0 0
    %162 = vmatprep.mubr.bf16.mxu0 0
    %163 = vmatmul.mubr.bf16.gmra.mxu0 %v128
    %v164 = vpop.f32.mrf.mxu0
    %v165 = vadd.f32 %v112, %v164
    %v166 = vpop.f32.mrf.mxu0
    %v167 = vpop.f32.mrf.mxu0
    %v168 = vpop.f32.mrf.mxu0
    %169 = vdwg.mxu0
    %v170 = vmax.f32 %v165, 0.0
    %v171 = vsel %vm126, %v170, 0.0
    %172 = vadd.xlane.f32.xlu0 %v171
    %v173 = vpop.xlane.xlu0 %172
    %v174 = vrcp.pop 32.0
    %v175 = vmul.f32 %v173, %v174
    %v176 = vmul.f32 %v170, %v170
    %v177 = vsel %vm126, %v176, 0.0
    %178 = vadd.xlane.f32.xlu0 %v177
    %v179 = vpop.xlane.xlu0 %178
    %v180 = vmul.f32 %v179, %v174
    %v181 = vmul.f32 %v175, %v175
    %v182 = vsub.f32 %v180, %v181
    %v183 = vmax.f32 %v182, 0.0
    %v184 = vsub.f32 %v170, %v175
    %v185 = vadd.f32 %v183, 1e-05
    %v186 = vrsqrt.pop %v185
    %v187 = vmul.f32 %v184, %v186
    %v188 = vld [vmem:[%s4] sm:$0x1]
    %v190 = vlaneseq
    %v191 = vshrl.u32 %v190, 7
    %v192 = vsub.s32 0, %v191
    %v193 = vrot.slane %v188, %v192
    %v195 = vmul.f32 %v187, %v193
    %v196 = vld [vmem:[%s5] sm:$0x1]
    %v198 = vlaneseq
    %v199 = vshrl.u32 %v198, 7
    %v200 = vsub.s32 0, %v199
    %v201 = vrot.slane %v196, %v200
    %v203 = vadd.f32 %v195, %v201
    %v204 = vpack.c.bf16 %v203, %v203
    %vm205 = vcmask 257024
    %206 = vst.msk [vmem:[%s6] sm:$0xf] %vm205, %v204
    // Predicated region
    $region70: #{masklm_pallas.2} parent=1 // pred_check
      _
    $region71: #{masklm_pallas.2} parent=1 // pred_check_branch
      %208 = sbr.rel (0) target = $region73
    $region72: #{masklm_pallas.2} parent=1 // pred_region
      _
    $region73: #{masklm_pallas.2} parent=1 // pred_fallthru
      _
    // Predicated region
    $region74: #{masklm_pallas.2} parent=1 // pred_check
      _
    $region75: #{masklm_pallas.2} parent=1 // pred_check_branch
      %210 = sbr.rel (0) target = $region77
    $region76: #{masklm_pallas.2} parent=1 // pred_region
      _
    $region77: #{masklm_pallas.2} parent=1 // pred_fallthru
      _
    %211 = vsyncpa [#allocation5], 1
  %212 = vsyncmov [#allocation3]
  %s213 = vpop.sfrf %212
  %p214 = scmp.eq.s32.totalorder %s213, 0
  %p215 = pneg %p214
  %217 = shalt.err (%p215)
  %s218 = scalar_lea.sflag [#allocation3], 1
  %219 = vsyncmov %s218
  %s220 = vpop.sfrf %219
  %p221 = scmp.eq.s32.totalorder %s220, 0
  %p222 = pneg %p221
  %224 = shalt.err (%p222)
  %s225 = scalar_lea.sflag [#allocation3], 2
  %226 = vsyncmov %s225
  %s227 = vpop.sfrf %226
  %p228 = scmp.eq.s32.totalorder %s227, 0
  %p229 = pneg %p228
  %231 = shalt.err (%p229)
  %s232 = scalar_lea.sflag [#allocation3], 3
  %233 = vsyncmov %s232
  %s234 = vpop.sfrf %233
  %p235 = scmp.eq.s32.totalorder %s234, 0
  %p236 = pneg %p235
  %238 = shalt.err (%p236)
  %s239 = scalar_lea.sflag [#allocation3], 4
  %240 = vsyncmov %s239
  %s241 = vpop.sfrf %240
  %p242 = scmp.eq.s32.totalorder %s241, 0
  %p243 = pneg %p242
  %245 = shalt.err (%p243)
  %s246 = scalar_lea.sflag [#allocation3], 5
  %247 = vsyncmov %s246
  %s248 = vpop.sfrf %247
  %p249 = scmp.eq.s32.totalorder %s248, 0
  %p250 = pneg %p249
  %252 = shalt.err (%p250)
  %s253 = scalar_lea.sflag [#allocation3], 6
  %254 = vsyncmov %s253
  %s255 = vpop.sfrf %254
  %p256 = scmp.eq.s32.totalorder %s255, 0
  %p257 = pneg %p256
  %259 = shalt.err (%p257)
  %s260 = scalar_lea.sflag [#allocation3], 7
  %261 = vsyncmov %s260
  %s262 = vpop.sfrf %261
  %p263 = scmp.eq.s32.totalorder %s262, 0
  %p264 = pneg %p263
  %266 = shalt.err (%p264)

</llo_original>
